<compile_context>
chip_gen: v7x
topology: tpu7x:2x2x1
jax: 0.10.0
libtpu: 0.0.40
codegen_flags: <defaults>
</compile_context>

<pallas_src>
import functools

import jax
import jax.numpy as jnp
from jax.experimental import pallas as pl
from jax.experimental.pallas import tpu as pltpu


def _panda_head_kernel(inv_s, tiles_per_block,
                       x_ref, w1m_ref, w1a_ref, b1_ref, w2_ref, b2_ref,
                       out_ref, max_acc, sum_acc):
    """Fused head over grid (batch, tile_block).

    x_ref  : (Tb, C, S)  Tb backbone tiles' feature maps (S = H*W on lanes)
    w1m/w1a: (C, D)      BN1-folded Linear1 weight, split into max/avg halves
    b1     : (1, D)      BN1-folded Linear1 bias
    w2     : (1, D)      BN2-folded Linear2 weight as a lane row
    b2     : (1, 1)      BN2-folded Linear2 bias
    out_ref: (1, 1, 1)   logit for this batch element
    max_acc/sum_acc: (C, S) f32 running pooling accumulators (VMEM scratch)
    """
    t = pl.program_id(1)

    @pl.when(t == 0)
    def _init():
        max_acc[...] = jnp.full_like(max_acc, -jnp.inf)
        sum_acc[...] = jnp.zeros_like(sum_acc)

    # Steady state: pure VPU elementwise accumulation, one tile at a time
    # (static Python loop, unrolled at trace time).  No cross-lane reduce and
    # no relayout here -> hides entirely under the streaming DMA.
    for i in range(tiles_per_block):
        xi = x_ref[i].astype(jnp.float32)              # (C, S), f32 accumulate
        max_acc[...] = jnp.maximum(max_acc[...], xi)
        sum_acc[...] = sum_acc[...] + xi

    @pl.when(t == pl.num_programs(1) - 1)
    def _finalize():
        # Single cross-lane reduce + (C,)->(1,C) relayout, once per batch elem.
        mx = jnp.max(max_acc[...], axis=-1)[None, :]                 # (1, C)
        av = (jnp.sum(sum_acc[...], axis=-1) * inv_s)[None, :]       # (1, C)
        # Weights may be stored bf16; expand to f32 once here (footprint in
        # HBM/VMEM is what matters, the M=1 matmul is compute-negligible).
        w1m = w1m_ref[...].astype(jnp.float32)
        w1a = w1a_ref[...].astype(jnp.float32)
        # concat([max, avg]) @ w1  ==  mx @ w1_max + av @ w1_avg  (no relayout)
        h = (jnp.dot(mx, w1m, preferred_element_type=jnp.float32)
             + jnp.dot(av, w1a, preferred_element_type=jnp.float32)
             + b1_ref[...].astype(jnp.float32))                      # (1, D)
        # Mish: x * tanh(softplus(x))
        h = h * jnp.tanh(jnp.logaddexp(h, 0.0))
        # Linear(D -> 1) as VPU multiply + lane reduce (avoids N=1 MXU matmul).
        y = (jnp.sum(h * w2_ref[...].astype(jnp.float32), axis=-1, keepdims=True)
             + b2_ref[...].astype(jnp.float32))                      # (1, 1)
        out_ref[...] = y.reshape(1, 1, 1)


def _pick_tile_block(T, C, S, itemsize, x_vmem_budget_bytes):
    """Largest divisor Tb of T whose double-buffered (Tb,C,S) block fits."""
    best = 1
    for tb in range(1, T + 1):
        if T % tb == 0 and 2 * tb * C * S * itemsize <= x_vmem_budget_bytes:
            best = tb
    return best


def panda_head(feat, fp):
    """feat: (bs, T, C, H, W) backbone features -> logits (bs, 1)."""
    bs, T, C, H, W = feat.shape
    S = H * W
    D = fp["b1"].shape[-1]
    # Pure reshape of contiguous (bs,T,C,H,W): no HBM copy, no transpose.
    x = feat.reshape(bs * T, C, S)
    inv_s = 1.0 / float(T * S)

    # Generation-aware VMEM limit: ~3/4 of physical VMEM, capped at 100 MiB
    # (v7x: 64 MiB -> 48 MiB; v5e/v6e: 128 MiB -> ~96 MiB).
    try:
        vmem_cap = int(pltpu.get_tpu_info().vmem_capacity_bytes)
    except Exception:
        vmem_cap = 64 * 1024 * 1024
    vmem_limit = int(min((vmem_cap * 3) // 4, 100 * 1024 * 1024))

    # Size the tile block against ~half the limit (rest: weights + scratch).
    tb = _pick_tile_block(T, C, S, x.dtype.itemsize, vmem_limit // 2)
    n_t = T // tb

    kernel = functools.partial(_panda_head_kernel, inv_s, tb)
    grid_spec = pltpu.PrefetchScalarGridSpec(
        num_scalar_prefetch=0,
        grid=(bs, n_t),
        in_specs=[
            # x: one (Tb, C, S) slab per grid step, double-buffered by Pallas.
            pl.BlockSpec((tb, C, S), lambda b, t: (b * n_t + t, 0, 0)),
            # Weights: constant block index -> fetched once, VMEM-resident.
            pl.BlockSpec((C, D), lambda b, t: (0, 0)),
            pl.BlockSpec((C, D), lambda b, t: (0, 0)),
            pl.BlockSpec((1, D), lambda b, t: (0, 0)),
            pl.BlockSpec((1, D), lambda b, t: (0, 0)),
            pl.BlockSpec((1, 1), lambda b, t: (0, 0)),
        ],
        out_specs=pl.BlockSpec((1, 1, 1), lambda b, t: (b, 0, 0)),
        scratch_shapes=[pltpu.VMEM((C, S), jnp.float32),
                        pltpu.VMEM((C, S), jnp.float32)],
    )
    out = pl.pallas_call(
        kernel,
        out_shape=jax.ShapeDtypeStruct((bs, 1, 1), jnp.float32),
        grid_spec=grid_spec,
        compiler_params=pltpu.CompilerParams(
            # batch axis sharded across TCs (v7x megacore); reduction axis
            # last, "arbitrary" (sequential per batch element).
            dimension_semantics=("parallel", "arbitrary"),
            vmem_limit_bytes=vmem_limit,
        ),
    )(x, fp["w1_max"], fp["w1_avg"], fp["b1"], fp["w2_row"], fp["b2"])
    return out.reshape(bs, 1)


def fold_params(params, C, param_dtype=jnp.float32):
    """Fold eval-mode BatchNorms into the Linears and split w1 (host-side)."""
    s1 = params["s1"].reshape(-1)          # (2C,)
    o1 = params["o1"].reshape(-1)
    w1 = params["w1"]                      # (2C, D)
    b1 = params["b1"].reshape(-1)          # (D,)
    s2 = params["s2"].reshape(-1)          # (D,)
    o2 = params["o2"].reshape(-1)
    w2 = params["w2"]                      # (D, 1)
    b2 = params["b2"].reshape(-1)          # (1,)

    w1f = s1[:, None] * w1                 # BN1 folded into Linear1
    b1f = o1 @ w1 + b1
    w2f = s2[:, None] * w2                 # BN2 folded into Linear2
    b2f = o2 @ w2 + b2
    return {
        "w1_max": w1f[:C].astype(param_dtype),   # (C, D) — max-pool half
        "w1_avg": w1f[C:].astype(param_dtype),   # (C, D) — avg-pool half
        "b1": b1f.reshape(1, -1),                # (1, D) f32
        "w2_row": w2f.reshape(1, -1).astype(param_dtype),  # (1, D)
        "b2": b2f.reshape(1, 1),                 # (1, 1) f32
    }


def panda_forward(feat, params, param_dtype=jnp.float32):
    """feat: backbone features (bs, num_tiles, C, H, W) -> (bs, 1).

    The PyTorch tile merge (permute + view) is skipped entirely: global
    max/mean pooling over the merged spatial extent equals pooling over the
    raw (tile, H, W) elements, so no HBM transpose copy is needed.
    """
    _, _, C, _, _ = feat.shape
    return panda_head(feat, fold_params(params, C, param_dtype))


def _ref_forward(feat, params):
    """Pure-JAX reference of the original (unfolded, transposed) head."""
    bs, T, C, H, W = feat.shape
    x = jnp.transpose(feat, (0, 2, 1, 3, 4)).reshape(bs, C, T * H, W)
    x = x.reshape(bs, C, -1)
    pooled = jnp.concatenate([jnp.max(x, axis=-1), jnp.mean(x, axis=-1)], axis=1)
    h = pooled * params["s1"] + params["o1"]
    h = h @ params["w1"] + params["b1"]
    h = h * jnp.tanh(jax.nn.softplus(h))
    h = h * params["s2"] + params["o2"]
    return h @ params["w2"] + params["b2"]


def make_params(key, nc, hidden=512):
    """Deterministic synthetic parameters matching the PyTorch head shapes."""
    ks = jax.random.split(key, 8)
    eps = 1e-5
    # BatchNorm1d(2*nc): gamma, beta, running stats -> folded scale/offset
    g1 = 1.0 + 0.1 * jax.random.normal(ks[0], (2 * nc,), jnp.float32)
    be1 = 0.1 * jax.random.normal(ks[1], (2 * nc,), jnp.float32)
    rm1 = jnp.zeros((2 * nc,), jnp.float32)
    rv1 = jnp.ones((2 * nc,), jnp.float32)
    s1 = g1 / jnp.sqrt(rv1 + eps)
    o1 = be1 - rm1 * s1
    # Linear(2*nc, hidden)
    w1 = 0.02 * jax.random.normal(ks[2], (2 * nc, hidden), jnp.float32)
    b1 = 0.02 * jax.random.normal(ks[3], (hidden,), jnp.float32)
    # BatchNorm1d(hidden)
    g2 = 1.0 + 0.1 * jax.random.normal(ks[4], (hidden,), jnp.float32)
    be2 = 0.1 * jax.random.normal(ks[5], (hidden,), jnp.float32)
    s2 = g2 / jnp.sqrt(jnp.ones((hidden,), jnp.float32) + eps)
    o2 = be2
    # Linear(hidden, 1)
    w2 = 0.05 * jax.random.normal(ks[6], (hidden, 1), jnp.float32)
    b2 = 0.05 * jax.random.normal(ks[7], (1,), jnp.float32)
    return {
        "s1": s1.reshape(1, -1), "o1": o1.reshape(1, -1),
        "w1": w1, "b1": b1.reshape(1, -1),
        "s2": s2.reshape(1, -1), "o2": o2.reshape(1, -1),
        "w2": w2, "b2": b2.reshape(1, -1),
    }


if __name__ == "__main__":
    key = jax.random.PRNGKey(0)
    k_feat, k_par = jax.random.split(key)

    # nc = backbone feature channels (multiple of 16 for clean bf16 packing).
    bs, num_tiles, nc, h, w = 2, 4, 32, 8, 8
    feat = jax.random.normal(k_feat, (bs, num_tiles, nc, h, w), jnp.float32)
    params = make_params(k_par, nc)

    ref = jax.block_until_ready(_ref_forward(feat, params))

    # f32 path: must match the unfolded reference tightly.
    out = jax.block_until_ready(panda_forward(feat, params))
    assert out.shape == (bs, 1), out.shape
    assert jnp.allclose(out, ref, atol=1e-4, rtol=1e-4), (out, ref)

    # bf16 streaming path (perf config): bf16 feature maps + bf16 matmul
    # weights, f32 accumulation in-kernel; looser tolerance vs f32 reference.
    out_bf16 = jax.block_until_ready(
        panda_forward(feat.astype(jnp.bfloat16), params,
                      param_dtype=jnp.bfloat16))
    assert out_bf16.shape == (bs, 1), out_bf16.shape
    assert jnp.allclose(out_bf16, ref, atol=5e-2, rtol=5e-2), (out_bf16, ref)

    print("KERNEL_OK")
</pallas_src>

<mosaic_0001>
module attributes {stable_mosaic.version = 11 : i64} {
  func.func @_panda_head_kernel(%arg0: i32, %arg1: i32, %arg2: memref<4x32x64xf32, #tpu.memory_space<vmem>>, %arg3: memref<32x512xf32, #tpu.memory_space<vmem>>, %arg4: memref<32x512xf32, #tpu.memory_space<vmem>>, %arg5: memref<1x512xf32, #tpu.memory_space<vmem>>, %arg6: memref<1x512xf32, #tpu.memory_space<vmem>>, %arg7: memref<1x1xf32, #tpu.memory_space<vmem>>, %arg8: memref<1x1x1xf32, #tpu.memory_space<vmem>>, %arg9: memref<32x64xf32, #tpu.memory_space<vmem>>, %arg10: memref<32x64xf32, #tpu.memory_space<vmem>>) attributes {dimension_semantics = [#tpu.dimension_semantics<parallel>, #tpu.dimension_semantics<arbitrary>], iteration_bounds = array<i64: 2, 1>, scalar_prefetch = 0 : i64, scratch_operands = 2 : i64, tpu.core_type = #tpu.core_type<tc>, window_params = [{transform_indices = @transform_0, window_bounds = array<i64: 4, 32, 64>}, {pipeline_mode = #tpu.pipeline_mode<synchronous>, transform_indices = @transform_1, window_bounds = array<i64: 32, 512>}, {pipeline_mode = #tpu.pipeline_mode<synchronous>, transform_indices = @transform_2, window_bounds = array<i64: 32, 512>}, {pipeline_mode = #tpu.pipeline_mode<synchronous>, transform_indices = @transform_3, window_bounds = array<i64: 1, 512>}, {pipeline_mode = #tpu.pipeline_mode<synchronous>, transform_indices = @transform_4, window_bounds = array<i64: 1, 512>}, {pipeline_mode = #tpu.pipeline_mode<synchronous>, transform_indices = @transform_5, window_bounds = array<i64: 1, 1>}, {transform_indices = @transform_6, window_bounds = array<i64: 1, 1, 1>}]} {
    %c0_i32 = arith.constant 0 : i32
    %0 = arith.cmpi eq, %arg1, %c0_i32 : i32
    %1 = arith.extui %0 : i1 to i32
    %c0_i32_0 = arith.constant 0 : i32
    %2 = arith.cmpi ne, %1, %c0_i32_0 : i32
    scf.if %2 {
      %cst = arith.constant 0xFF800000 : f32
      %38 = vector.broadcast %cst : f32 to vector<32x64xf32>
      %c0_43 = arith.constant 0 : index
      %c0_44 = arith.constant 0 : index
      %39 = vector.load %arg9[%c0_43, %c0_44] : memref<32x64xf32, #tpu.memory_space<vmem>>, vector<32x64xf32>
      tpu.vector_store %arg9[%c0_43, %c0_44], %38 {strides = array<i32>} : memref<32x64xf32, #tpu.memory_space<vmem>>, vector<32x64xf32>,
      %cst_45 = arith.constant 0.000000e+00 : f32
      %40 = vector.broadcast %cst_45 : f32 to vector<32x64xf32>
      %c0_46 = arith.constant 0 : index
      %c0_47 = arith.constant 0 : index
      %41 = vector.load %arg10[%c0_46, %c0_47] : memref<32x64xf32, #tpu.memory_space<vmem>>, vector<32x64xf32>
      tpu.vector_store %arg10[%c0_46, %c0_47], %40 {strides = array<i32>} : memref<32x64xf32, #tpu.memory_space<vmem>>, vector<32x64xf32>,
    } else {
    }
    %c0 = arith.constant 0 : index
    %c0_1 = arith.constant 0 : index
    %c0_2 = arith.constant 0 : index
    %3 = vector.load %arg2[%c0, %c0_1, %c0_2] : memref<4x32x64xf32, #tpu.memory_space<vmem>>, vector<1x32x64xf32>
    %4 = vector.shape_cast %3 : vector<1x32x64xf32> to vector<32x64xf32>
    %c0_3 = arith.constant 0 : index
    %c0_4 = arith.constant 0 : index
    %5 = vector.load %arg9[%c0_3, %c0_4] : memref<32x64xf32, #tpu.memory_space<vmem>>, vector<32x64xf32>
    %6 = arith.maximumf %5, %4 : vector<32x64xf32>
    %c0_5 = arith.constant 0 : index
    %c0_6 = arith.constant 0 : index
    %7 = vector.load %arg9[%c0_5, %c0_6] : memref<32x64xf32, #tpu.memory_space<vmem>>, vector<32x64xf32>
    tpu.vector_store %arg9[%c0_5, %c0_6], %6 {strides = array<i32>} : memref<32x64xf32, #tpu.memory_space<vmem>>, vector<32x64xf32>,
    %c0_7 = arith.constant 0 : index
    %c0_8 = arith.constant 0 : index
    %8 = vector.load %arg10[%c0_7, %c0_8] : memref<32x64xf32, #tpu.memory_space<vmem>>, vector<32x64xf32>
    %9 = arith.addf %8, %4 : vector<32x64xf32>
    %c0_9 = arith.constant 0 : index
    %c0_10 = arith.constant 0 : index
    %10 = vector.load %arg10[%c0_9, %c0_10] : memref<32x64xf32, #tpu.memory_space<vmem>>, vector<32x64xf32>
    tpu.vector_store %arg10[%c0_9, %c0_10], %9 {strides = array<i32>} : memref<32x64xf32, #tpu.memory_space<vmem>>, vector<32x64xf32>,
    %c1 = arith.constant 1 : index
    %c0_11 = arith.constant 0 : index
    %c0_12 = arith.constant 0 : index
    %11 = vector.load %arg2[%c1, %c0_11, %c0_12] : memref<4x32x64xf32, #tpu.memory_space<vmem>>, vector<1x32x64xf32>
    %12 = vector.shape_cast %11 : vector<1x32x64xf32> to vector<32x64xf32>
    %c0_13 = arith.constant 0 : index
    %c0_14 = arith.constant 0 : index
    %13 = vector.load %arg9[%c0_13, %c0_14] : memref<32x64xf32, #tpu.memory_space<vmem>>, vector<32x64xf32>
    %14 = arith.maximumf %13, %12 : vector<32x64xf32>
    %c0_15 = arith.constant 0 : index
    %c0_16 = arith.constant 0 : index
    %15 = vector.load %arg9[%c0_15, %c0_16] : memref<32x64xf32, #tpu.memory_space<vmem>>, vector<32x64xf32>
    tpu.vector_store %arg9[%c0_15, %c0_16], %14 {strides = array<i32>} : memref<32x64xf32, #tpu.memory_space<vmem>>, vector<32x64xf32>,
    %c0_17 = arith.constant 0 : index
    %c0_18 = arith.constant 0 : index
    %16 = vector.load %arg10[%c0_17, %c0_18] : memref<32x64xf32, #tpu.memory_space<vmem>>, vector<32x64xf32>
    %17 = arith.addf %16, %12 : vector<32x64xf32>
    %c0_19 = arith.constant 0 : index
    %c0_20 = arith.constant 0 : index
    %18 = vector.load %arg10[%c0_19, %c0_20] : memref<32x64xf32, #tpu.memory_space<vmem>>, vector<32x64xf32>
    tpu.vector_store %arg10[%c0_19, %c0_20], %17 {strides = array<i32>} : memref<32x64xf32, #tpu.memory_space<vmem>>, vector<32x64xf32>,
    %c2 = arith.constant 2 : index
    %c0_21 = arith.constant 0 : index
    %c0_22 = arith.constant 0 : index
    %19 = vector.load %arg2[%c2, %c0_21, %c0_22] : memref<4x32x64xf32, #tpu.memory_space<vmem>>, vector<1x32x64xf32>
    %20 = vector.shape_cast %19 : vector<1x32x64xf32> to vector<32x64xf32>
    %c0_23 = arith.constant 0 : index
    %c0_24 = arith.constant 0 : index
    %21 = vector.load %arg9[%c0_23, %c0_24] : memref<32x64xf32, #tpu.memory_space<vmem>>, vector<32x64xf32>
    %22 = arith.maximumf %21, %20 : vector<32x64xf32>
    %c0_25 = arith.constant 0 : index
    %c0_26 = arith.constant 0 : index
    %23 = vector.load %arg9[%c0_25, %c0_26] : memref<32x64xf32, #tpu.memory_space<vmem>>, vector<32x64xf32>
    tpu.vector_store %arg9[%c0_25, %c0_26], %22 {strides = array<i32>} : memref<32x64xf32, #tpu.memory_space<vmem>>, vector<32x64xf32>,
    %c0_27 = arith.constant 0 : index
    %c0_28 = arith.constant 0 : index
    %24 = vector.load %arg10[%c0_27, %c0_28] : memref<32x64xf32, #tpu.memory_space<vmem>>, vector<32x64xf32>
    %25 = arith.addf %24, %20 : vector<32x64xf32>
    %c0_29 = arith.constant 0 : index
    %c0_30 = arith.constant 0 : index
    %26 = vector.load %arg10[%c0_29, %c0_30] : memref<32x64xf32, #tpu.memory_space<vmem>>, vector<32x64xf32>
    tpu.vector_store %arg10[%c0_29, %c0_30], %25 {strides = array<i32>} : memref<32x64xf32, #tpu.memory_space<vmem>>, vector<32x64xf32>,
    %c3 = arith.constant 3 : index
    %c0_31 = arith.constant 0 : index
    %c0_32 = arith.constant 0 : index
    %27 = vector.load %arg2[%c3, %c0_31, %c0_32] : memref<4x32x64xf32, #tpu.memory_space<vmem>>, vector<1x32x64xf32>
    %28 = vector.shape_cast %27 : vector<1x32x64xf32> to vector<32x64xf32>
    %c0_33 = arith.constant 0 : index
    %c0_34 = arith.constant 0 : index
    %29 = vector.load %arg9[%c0_33, %c0_34] : memref<32x64xf32, #tpu.memory_space<vmem>>, vector<32x64xf32>
    %30 = arith.maximumf %29, %28 : vector<32x64xf32>
    %c0_35 = arith.constant 0 : index
    %c0_36 = arith.constant 0 : index
    %31 = vector.load %arg9[%c0_35, %c0_36] : memref<32x64xf32, #tpu.memory_space<vmem>>, vector<32x64xf32>
    tpu.vector_store %arg9[%c0_35, %c0_36], %30 {strides = array<i32>} : memref<32x64xf32, #tpu.memory_space<vmem>>, vector<32x64xf32>,
    %c0_37 = arith.constant 0 : index
    %c0_38 = arith.constant 0 : index
    %32 = vector.load %arg10[%c0_37, %c0_38] : memref<32x64xf32, #tpu.memory_space<vmem>>, vector<32x64xf32>
    %33 = arith.addf %32, %28 : vector<32x64xf32>
    %c0_39 = arith.constant 0 : index
    %c0_40 = arith.constant 0 : index
    %34 = vector.load %arg10[%c0_39, %c0_40] : memref<32x64xf32, #tpu.memory_space<vmem>>, vector<32x64xf32>
    tpu.vector_store %arg10[%c0_39, %c0_40], %33 {strides = array<i32>} : memref<32x64xf32, #tpu.memory_space<vmem>>, vector<32x64xf32>,
    %c0_i32_41 = arith.constant 0 : i32
    %35 = arith.cmpi eq, %arg1, %c0_i32_41 : i32
    %36 = arith.extui %35 : i1 to i32
    %c0_i32_42 = arith.constant 0 : i32
    %37 = arith.cmpi ne, %36, %c0_i32_42 : i32
    scf.if %37 {
      %c0_43 = arith.constant 0 : index
      %c0_44 = arith.constant 0 : index
      %38 = vector.load %arg9[%c0_43, %c0_44] : memref<32x64xf32, #tpu.memory_space<vmem>>, vector<32x64xf32>
      %cst = arith.constant dense<0xFF800000> : vector<32xf32>
      %39 = vector.multi_reduction <maximumf>, %38, %cst [1] : vector<32x64xf32> to vector<32xf32>
      %40 = vector.shape_cast %39 : vector<32xf32> to vector<1x32xf32>
      %c0_45 = arith.constant 0 : index
      %c0_46 = arith.constant 0 : index
      %41 = vector.load %arg10[%c0_45, %c0_46] : memref<32x64xf32, #tpu.memory_space<vmem>>, vector<32x64xf32>
      %cst_47 = arith.constant dense<0.000000e+00> : vector<32xf32>
      %42 = vector.multi_reduction <add>, %41, %cst_47 [1] : vector<32x64xf32> to vector<32xf32>
      %cst_48 = arith.constant 3.906250e-03 : f32
      %43 = vector.broadcast %cst_48 : f32 to vector<32xf32>
      %44 = arith.mulf %42, %43 : vector<32xf32>
      %45 = vector.shape_cast %44 : vector<32xf32> to vector<1x32xf32>
      %c0_49 = arith.constant 0 : index
      %c0_50 = arith.constant 0 : index
      %46 = vector.load %arg3[%c0_49, %c0_50] : memref<32x512xf32, #tpu.memory_space<vmem>>, vector<32x512xf32>
      %c0_51 = arith.constant 0 : index
      %c0_52 = arith.constant 0 : index
      %47 = vector.load %arg4[%c0_51, %c0_52] : memref<32x512xf32, #tpu.memory_space<vmem>>, vector<32x512xf32>
      %cst_53 = arith.constant dense<0.000000e+00> : vector<1x512xf32>
      %48 = tpu.matmul %40, %46, %cst_53 {dimension_numbers = #tpu.dot_dimension_numbers<[1], [0], [0], [1], [0, 0, 1, 1], [], []>} : vector<1x32xf32>, vector<32x512xf32>, vector<1x512xf32> -> vector<1x512xf32>
      %cst_54 = arith.constant dense<0.000000e+00> : vector<1x512xf32>
      %49 = tpu.matmul %45, %47, %cst_54 {dimension_numbers = #tpu.dot_dimension_numbers<[1], [0], [0], [1], [0, 0, 1, 1], [], []>} : vector<1x32xf32>, vector<32x512xf32>, vector<1x512xf32> -> vector<1x512xf32>
      %50 = arith.addf %48, %49 : vector<1x512xf32>
      %c0_55 = arith.constant 0 : index
      %c0_56 = arith.constant 0 : index
      %51 = vector.load %arg5[%c0_55, %c0_56] : memref<1x512xf32, #tpu.memory_space<vmem>>, vector<1x512xf32>
      %52 = arith.addf %50, %51 : vector<1x512xf32>
      %cst_57 = arith.constant 0.000000e+00 : f32
      %53 = vector.broadcast %cst_57 : f32 to vector<1x512xf32>
      %54 = arith.maximumf %52, %53 : vector<1x512xf32>
      %55 = vector.broadcast %cst_57 : f32 to vector<1x512xf32>
      %56 = arith.subf %52, %55 : vector<1x512xf32>
      %57 = arith.cmpf one, %56, %56 : vector<1x512xf32>
      %58 = vector.broadcast %cst_57 : f32 to vector<1x512xf32>
      %59 = arith.addf %52, %58 : vector<1x512xf32>
      %60 = math.absf %56 : vector<1x512xf32>
      %cst_58 = arith.constant 0.000000e+00 : f32
      %61 = vector.broadcast %cst_58 : f32 to vector<1x512xf32>
      %62 = arith.subf %61, %60 : vector<1x512xf32>
      %63 = math.exp %62 : vector<1x512xf32>
      %64 = math.log1p %63 : vector<1x512xf32>
      %65 = arith.addf %54, %64 : vector<1x512xf32>
      %66 = arith.select %57, %59, %65 : vector<1x512xi1>, vector<1x512xf32>
      %67 = math.tanh %66 : vector<1x512xf32>
      %68 = arith.mulf %52, %67 : vector<1x512xf32>
      %c0_59 = arith.constant 0 : index
      %c0_60 = arith.constant 0 : index
      %69 = vector.load %arg6[%c0_59, %c0_60] : memref<1x512xf32, #tpu.memory_space<vmem>>, vector<1x512xf32>
      %70 = arith.mulf %68, %69 : vector<1x512xf32>
      %cst_61 = arith.constant dense<0.000000e+00> : vector<1xf32>
      %71 = vector.multi_reduction <add>, %70, %cst_61 [1] : vector<1x512xf32> to vector<1xf32>
      %72 = vector.shape_cast %71 : vector<1xf32> to vector<1x1xf32>
      %c0_62 = arith.constant 0 : index
      %c0_63 = arith.constant 0 : index
      %73 = vector.load %arg7[%c0_62, %c0_63] : memref<1x1xf32, #tpu.memory_space<vmem>>, vector<1x1xf32>
      %74 = arith.addf %72, %73 : vector<1x1xf32>
      %75 = vector.shape_cast %74 : vector<1x1xf32> to vector<1x1x1xf32>
      %c0_64 = arith.constant 0 : index
      %c0_65 = arith.constant 0 : index
      %c0_66 = arith.constant 0 : index
      %76 = vector.load %arg8[%c0_64, %c0_65, %c0_66] : memref<1x1x1xf32, #tpu.memory_space<vmem>>, vector<1x1x1xf32>
      tpu.vector_store %arg8[%c0_64, %c0_65, %c0_66], %75 {strides = array<i32>} : memref<1x1x1xf32, #tpu.memory_space<vmem>>, vector<1x1x1xf32>,
    } else {
    }
    return
  }
  func.func @transform_0(%arg0: i32, %arg1: i32) -> (i32, i32, i32) {
    %c1_i32 = arith.constant 1 : i32
    %0 = arith.muli %arg0, %c1_i32 : i32
    %1 = arith.addi %0, %arg1 : i32
    %c0_i32 = arith.constant 0 : i32
    %c0_i32_0 = arith.constant 0 : i32
    %c0_i32_1 = arith.constant 0 : i32
    return %1, %c0_i32, %c0_i32_0 : i32, i32, i32
  }
  func.func @transform_1(%arg0: i32, %arg1: i32) -> (i32, i32) {
    %c0_i32 = arith.constant 0 : i32
    %c0_i32_0 = arith.constant 0 : i32
    %c0_i32_1 = arith.constant 0 : i32
    return %c0_i32, %c0_i32_0 : i32, i32
  }
  func.func @transform_2(%arg0: i32, %arg1: i32) -> (i32, i32) {
    %c0_i32 = arith.constant 0 : i32
    %c0_i32_0 = arith.constant 0 : i32
    %c0_i32_1 = arith.constant 0 : i32
    return %c0_i32, %c0_i32_0 : i32, i32
  }
  func.func @transform_3(%arg0: i32, %arg1: i32) -> (i32, i32) {
    %c0_i32 = arith.constant 0 : i32
    %c0_i32_0 = arith.constant 0 : i32
    %c0_i32_1 = arith.constant 0 : i32
    return %c0_i32, %c0_i32_0 : i32, i32
  }
  func.func @transform_4(%arg0: i32, %arg1: i32) -> (i32, i32) {
    %c0_i32 = arith.constant 0 : i32
    %c0_i32_0 = arith.constant 0 : i32
    %c0_i32_1 = arith.constant 0 : i32
    return %c0_i32, %c0_i32_0 : i32, i32
  }
  func.func @transform_5(%arg0: i32, %arg1: i32) -> (i32, i32) {
    %c0_i32 = arith.constant 0 : i32
    %c0_i32_0 = arith.constant 0 : i32
    %c0_i32_1 = arith.constant 0 : i32
    return %c0_i32, %c0_i32_0 : i32, i32
  }
  func.func @transform_6(%arg0: i32, %arg1: i32) -> (i32, i32, i32) {
    %c0_i32 = arith.constant 0 : i32
    %c0_i32_0 = arith.constant 0 : i32
    %c0_i32_1 = arith.constant 0 : i32
    return %arg0, %c0_i32, %c0_i32_0 : i32, i32, i32
  }
}

</mosaic_0001>

<llo_original>
// kernel: tpu_custom_call.1
$region0: #{tpu_custom_call.1}
  #allocation0 [shape = 'u32[]', space=smem, size = 0x4, offset = 0x4, fixed_abs, tag = 'smem constant byte address 0x4 - core index']
  #allocation1 [shape = 'u32[144,128]{1,0:T(1,128)}', space=vmem, size = 0x12000, scoped, tag = 'internal scratch']
  #allocation2 [shape = 'f32[32,64]{1,0:T(8,128)}', space=vmem, size = 0x4000, scoped, tag = 'scratch operand']
  #allocation3 [shape = 'f32[32,64]{1,0:T(8,128)}', space=vmem, size = 0x4000, scoped, tag = 'scratch operand']
  #allocation4 [shape = 'f32[1,1]{1,0:T(1,128)S(1)}', space=vmem, size = 0x200, scoped, tag = 'scoped memory for tpu_custom_call.1']
  %s0 = inlined_call_operand.hbm [shape: f32[8,32,64], index: 0, kind: input, shape index: {}]
  %s1 = inlined_call_operand.hbm [shape: f32[32,512], index: 1, kind: input, shape index: {}]
  %s2 = inlined_call_operand.hbm [shape: f32[32,512], index: 2, kind: input, shape index: {}]
  %s3 = inlined_call_operand.vmem [shape: f32[1,512], index: 3, kind: input, shape index: {}]
  %s4 = inlined_call_operand.vmem [shape: f32[1,512], index: 4, kind: input, shape index: {}]
  %s5 = inlined_call_operand.<no memory space> [shape: f32[1,1], index: 5, kind: input, shape index: {}]
  %s6 = inlined_call_operand.vmem [shape: f32[2,1,1], index: 6, kind: output, shape index: {}]
  %s7 = sld [smem:[#allocation0]]
  $region77: #{tpu_custom_call.1} parent=0
    _
  %s9 = ssub.s32 1, %s7
  %s10 = scalar_select 0, %s9, %s7
  %v11 = vstv %s5
  %12 = vst [vmem:[#allocation4] sm:$0x1] %v11
  $region1: #{tpu_custom_call.1} parent=0
    #allocation5 [shape = 'u8[131072]{0}', space=vmem, size = 0x20000, scoped, tag = 'input window, operand 0']
    #allocation6 [shape = 's32[2]{0}', space=sflag, size = 0x8, scoped, tag = 'scoped memory for tpu_custom_call.1']
    #allocation7 [shape = 'u8[65536]{0}', space=vmem, size = 0x10000, scoped, tag = 'input window, operand 1, single buffered']
    #allocation8 [shape = 's32[1]{0}', space=sflag, size = 0x4, scoped, tag = 'scoped memory for tpu_custom_call.1']
    #allocation9 [shape = 'u8[65536]{0}', space=vmem, size = 0x10000, scoped, tag = 'input window, operand 2, single buffered']
    %13 = vsyncpa [#allocation6], 0
    %s14 = scalar_lea.sflag [#allocation6], 1
    %15 = vsyncpa %s14, 0
    %16 = vsyncpa [#allocation8], 0
    loop: start=0, step=1, limit=4
    $region2: #{tpu_custom_call.1} parent=1 // loop_pre_header
      _
    $region3: #{tpu_custom_call.1} parent=1 // loop_header
      %s18 = sphi 0, %s22
      %p19 = scmp.ge.s32.totalorder %s18, 4
      %s25 = sphi 0, %s37
      %s26 = sphi 0, %s33
      %s27 = sphi 0, %s25
      %s28 = sphi 0, %s26
      %s29 = sphi 0, %s27
      %s30 = sphi 0, %s28
      %s42 = sphi 0, %s44
      %s45 = sphi 0, %s42
      %s46 = sphi 0, %s45
      %s62 = sphi 0, %s46
      %s66 = sphi 0, %s66
      %s68 = sphi 0, %s66
      %s69 = sphi 0, %s68
      %s83 = sphi 0, %s69
      %s87 = sphi 0, %s87
      %s89 = sphi 0, %s87
      %s90 = sphi 0, %s89
      %s104 = sphi 0, %s90
      %s108 = sphi 0, %s108
      %s110 = sphi 0, %s108
      %s111 = sphi 0, %s110
      %s125 = sphi 0, %s111
      %s129 = sphi 0, %s129
      %s131 = sphi 0, %s129
      %s132 = sphi 0, %s131
      %s146 = sphi 0, %s132
      %s150 = sphi 0, %s150
      %s152 = sphi 0, %s150
      %s153 = sphi 0, %s152
      %s167 = sphi 0, %s153
      %s173 = sphi 0, %s175
      %s176 = sphi 0, %s173
      %s177 = sphi 0, %s176
      %s193 = sphi 0, %s177
    $region4: #{tpu_custom_call.1} parent=1 // loop_header_branch
      %21 = sbr.rel (%p19) target = $region8
    $region5: #{tpu_custom_call.1} parent=1 // loop_body
      %s23 = ssub.s32 %s18, 1
      %s24 = ssub.s32 %s18, 2
      %s31 = sadd.s32 1, %s26
      %p32 = scmp.ge.s32.totalorder %s31, 1
      %s33 = scalar_select %p32, 0, %s31
      %s34 = sadd.s32 1, %s25
      %s35 = scalar_select %p32, %s34, %s25
      %p36 = scmp.ge.s32.totalorder %s35, 2
      %s37 = scalar_select %p36, 0, %s35
      %s38 = sadd.s32 %s25, %s26
      %s39 = sadd.s32 %s37, %s33
      %s40 = ssub.s32 %s38, %s39
      %p41 = scmp.eq.s32.totalorder %s40, 0
      %s43 = sadd.s32 %s42, 1
      %s44 = scalar_select %p41, %s42, %s43
      %p47 = pneg %p41
      %p48 = scmp.eq.s32.totalorder %s18, 1
      %p49 = por %p47, %p48
      %p50 = scmp.ne.s32.totalorder %s42, %s45
      %p51 = scmp.eq.s32.totalorder %s18, 0
      %p52 = por %p50, %p51
      %p53 = scmp.ne.s32.totalorder %s42, %s45
      %p54 = scmp.eq.s32.totalorder %s23, 1
      %p55 = por %p53, %p54
      %p56 = scmp.ne.s32.totalorder %s45, %s46
      %p57 = scmp.eq.s32.totalorder %s23, 0
      %p58 = por %p56, %p57
      %p59 = scmp.ne.s32.totalorder %s45, %s46
      %p60 = scmp.eq.s32.totalorder %s24, 1
      %p61 = por %p59, %p60
      %p63 = scmp.ne.s32.totalorder %s46, %s62
      %p64 = scmp.eq.s32.totalorder %s24, 0
      %p65 = por %p63, %p64
      %s67 = sadd.s32 %s66, 1
      %p70 = scmp.eq.s32.totalorder %s18, 1
      %p71 = scmp.ne.s32.totalorder %s66, %s68
      %p72 = scmp.eq.s32.totalorder %s18, 0
      %p73 = por %p71, %p72
      %p74 = scmp.ne.s32.totalorder %s66, %s68
      %p75 = scmp.eq.s32.totalorder %s23, 1
      %p76 = por %p74, %p75
      %p77 = scmp.ne.s32.totalorder %s68, %s69
      %p78 = scmp.eq.s32.totalorder %s23, 0
      %p79 = por %p77, %p78
      %p80 = scmp.ne.s32.totalorder %s68, %s69
      %p81 = scmp.eq.s32.totalorder %s24, 1
      %p82 = por %p80, %p81
      %p84 = scmp.ne.s32.totalorder %s69, %s83
      %p85 = scmp.eq.s32.totalorder %s24, 0
      %p86 = por %p84, %p85
      %s88 = sadd.s32 %s87, 1
      %p91 = scmp.eq.s32.totalorder %s18, 1
      %p92 = scmp.ne.s32.totalorder %s87, %s89
      %p93 = scmp.eq.s32.totalorder %s18, 0
      %p94 = por %p92, %p93
      %p95 = scmp.ne.s32.totalorder %s87, %s89
      %p96 = scmp.eq.s32.totalorder %s23, 1
      %p97 = por %p95, %p96
      %p98 = scmp.ne.s32.totalorder %s89, %s90
      %p99 = scmp.eq.s32.totalorder %s23, 0
      %p100 = por %p98, %p99
      %p101 = scmp.ne.s32.totalorder %s89, %s90
      %p102 = scmp.eq.s32.totalorder %s24, 1
      %p103 = por %p101, %p102
      %p105 = scmp.ne.s32.totalorder %s90, %s104
      %p106 = scmp.eq.s32.totalorder %s24, 0
      %p107 = por %p105, %p106
      %s109 = sadd.s32 %s108, 1
      %p112 = scmp.eq.s32.totalorder %s18, 1
      %p113 = scmp.ne.s32.totalorder %s108, %s110
      %p114 = scmp.eq.s32.totalorder %s18, 0
      %p115 = por %p113, %p114
      %p116 = scmp.ne.s32.totalorder %s108, %s110
      %p117 = scmp.eq.s32.totalorder %s23, 1
      %p118 = por %p116, %p117
      %p119 = scmp.ne.s32.totalorder %s110, %s111
      %p120 = scmp.eq.s32.totalorder %s23, 0
      %p121 = por %p119, %p120
      %p122 = scmp.ne.s32.totalorder %s110, %s111
      %p123 = scmp.eq.s32.totalorder %s24, 1
      %p124 = por %p122, %p123
      %p126 = scmp.ne.s32.totalorder %s111, %s125
      %p127 = scmp.eq.s32.totalorder %s24, 0
      %p128 = por %p126, %p127
      %s130 = sadd.s32 %s129, 1
      %p133 = scmp.eq.s32.totalorder %s18, 1
      %p134 = scmp.ne.s32.totalorder %s129, %s131
      %p135 = scmp.eq.s32.totalorder %s18, 0
      %p136 = por %p134, %p135
      %p137 = scmp.ne.s32.totalorder %s129, %s131
      %p138 = scmp.eq.s32.totalorder %s23, 1
      %p139 = por %p137, %p138
      %p140 = scmp.ne.s32.totalorder %s131, %s132
      %p141 = scmp.eq.s32.totalorder %s23, 0
      %p142 = por %p140, %p141
      %p143 = scmp.ne.s32.totalorder %s131, %s132
      %p144 = scmp.eq.s32.totalorder %s24, 1
      %p145 = por %p143, %p144
      %p147 = scmp.ne.s32.totalorder %s132, %s146
      %p148 = scmp.eq.s32.totalorder %s24, 0
      %p149 = por %p147, %p148
      %s151 = sadd.s32 %s150, 1
      %p154 = scmp.eq.s32.totalorder %s18, 1
      %p155 = scmp.ne.s32.totalorder %s150, %s152
      %p156 = scmp.eq.s32.totalorder %s18, 0
      %p157 = por %p155, %p156
      %p158 = scmp.ne.s32.totalorder %s150, %s152
      %p159 = scmp.eq.s32.totalorder %s23, 1
      %p160 = por %p158, %p159
      %p161 = scmp.ne.s32.totalorder %s152, %s153
      %p162 = scmp.eq.s32.totalorder %s23, 0
      %p163 = por %p161, %p162
      %p164 = scmp.ne.s32.totalorder %s152, %s153
      %p165 = scmp.eq.s32.totalorder %s24, 1
      %p166 = por %p164, %p165
      %p168 = scmp.ne.s32.totalorder %s153, %s167
      %p169 = scmp.eq.s32.totalorder %s24, 0
      %p170 = por %p168, %p169
      %s171 = ssub.s32 %s25, %s37
      %p172 = scmp.eq.s32.totalorder %s171, 0
      %s174 = sadd.s32 %s173, 1
      %s175 = scalar_select %p172, %s173, %s174
      %p178 = pneg %p172
      %p179 = scmp.eq.s32.totalorder %s18, 1
      %p180 = por %p178, %p179
      %p181 = scmp.ne.s32.totalorder %s173, %s176
      %p182 = scmp.eq.s32.totalorder %s18, 0
      %p183 = por %p181, %p182
      %p184 = scmp.ne.s32.totalorder %s173, %s176
      %p185 = scmp.eq.s32.totalorder %s23, 1
      %p186 = por %p184, %p185
      %p187 = scmp.ne.s32.totalorder %s176, %s177
      %p188 = scmp.eq.s32.totalorder %s23, 0
      %p189 = por %p187, %p188
      %p190 = scmp.ne.s32.totalorder %s176, %s177
      %p191 = scmp.eq.s32.totalorder %s24, 1
      %p192 = por %p190, %p191
      %p194 = scmp.ne.s32.totalorder %s177, %s193
      %p195 = scmp.eq.s32.totalorder %s24, 0
      %p196 = por %p194, %p195
      %p197 = scmp.le.s32.totalorder 1, %s18
      %p198 = scmp.lt.s32.totalorder %s18, 3
      %p199 = pnand %p197, %p198
      %p200 = pneg %p199
      // Predicated region
      $region9: #{tpu_custom_call.1} parent=5 // pred_check
        _
      $region10: #{tpu_custom_call.1} parent=5 // pred_check_branch
        %202 = sbr.rel (%p199) target = $region12
      $region11: #{tpu_custom_call.1} parent=5 // pred_region
        %s203 = ssub.s32 %s18, 1
        // Predicated region
        $region13: #{tpu_custom_call.1} parent=11 // pred_check
          %p204 = pneg %p79
        $region14: #{tpu_custom_call.1} parent=11 // pred_check_branch
          %206 = sbr.rel (%p204) target = $region16
        $region15: #{tpu_custom_call.1} parent=11 // pred_region
          %s208 = ssub.s32 2048, 2048
          %209 = vsyncadd [#allocation8], %s208
          %s210 = sshll.u32 [#allocation7], 4
          %s211 = int_to_ptr.vmem [resolvable:$true] %s210
          %216 = dma.hbm_to_vmem [thread:$0]  %s1, 2048, %s211, [#allocation8], 512, 512, 32
        $region16: #{tpu_custom_call.1} parent=11 // pred_fallthru
          _
        // Predicated region
        $region17: #{tpu_custom_call.1} parent=11 // pred_check
          %p217 = pneg %p100
        $region18: #{tpu_custom_call.1} parent=11 // pred_check_branch
          %219 = sbr.rel (%p217) target = $region20
        $region19: #{tpu_custom_call.1} parent=11 // pred_region
          %s221 = ssub.s32 2048, 2048
          %222 = vsyncadd [#allocation8], %s221
          %s223 = sshll.u32 [#allocation9], 4
          %s224 = int_to_ptr.vmem [resolvable:$true] %s223
          %229 = dma.hbm_to_vmem [thread:$0]  %s2, 2048, %s224, [#allocation8], 512, 512, 32
        $region20: #{tpu_custom_call.1} parent=11 // pred_fallthru
          _
        // Predicated region
        $region21: #{tpu_custom_call.1} parent=11 // pred_check
          %p230 = pneg %p121
        $region22: #{tpu_custom_call.1} parent=11 // pred_check_branch
          %232 = sbr.rel (%p230) target = $region24
        $region23: #{tpu_custom_call.1} parent=11 // pred_region
          _
        $region24: #{tpu_custom_call.1} parent=11 // pred_fallthru
          _
        // Predicated region
        $region25: #{tpu_custom_call.1} parent=11 // pred_check
          %p233 = pneg %p142
        $region26: #{tpu_custom_call.1} parent=11 // pred_check_branch
          %235 = sbr.rel (%p233) target = $region28
        $region27: #{tpu_custom_call.1} parent=11 // pred_region
          _
        $region28: #{tpu_custom_call.1} parent=11 // pred_fallthru
          _
        // Predicated region
        $region29: #{tpu_custom_call.1} parent=11 // pred_check
          %p236 = pneg %p163
        $region30: #{tpu_custom_call.1} parent=11 // pred_check_branch
          %238 = sbr.rel (%p236) target = $region32
        $region31: #{tpu_custom_call.1} parent=11 // pred_region
          _
        $region32: #{tpu_custom_call.1} parent=11 // pred_fallthru
          _
      $region12: #{tpu_custom_call.1} parent=5 // pred_fallthru
        _
      %p239 = scmp.lt.s32.totalorder %s18, 2
      // Predicated region
      $region33: #{tpu_custom_call.1} parent=5 // pred_check
        %p240 = pneg %p239
      $region34: #{tpu_custom_call.1} parent=5 // pred_check_branch
        %242 = sbr.rel (%p240) target = $region36
      $region35: #{tpu_custom_call.1} parent=5 // pred_region
        // Predicated region
        $region37: #{tpu_custom_call.1} parent=35 // pred_check
          %p243 = pneg %p52
        $region38: #{tpu_custom_call.1} parent=35 // pred_check_branch
          %245 = sbr.rel (%p243) target = $region40
        $region39: #{tpu_custom_call.1} parent=35 // pred_region
          %s246 = sand.u32 %s42, 1
          %s247 = scalar_lea.sflag [#allocation6], %s246
          %s248 = sand.u32 %s42, 1
          %s249 = smul.addr %s248, 128
          %s250 = scalar_lea.vmem [#allocation5], %s249
          %s251 = sadd.s32 %s25, %s26
          %s252 = smul.u32 4, %s251
          %s254 = ssub.s32 2048, 2048
          %255 = vsyncadd %s247, %s254
          %s256 = smul.addr %s252, 4
          %s257 = smul.addr %s256, 128
          %s258 = scalar_lea.hbm %s0, %s257
          %s259 = sshll.u32 %s250, 4
          %s260 = int_to_ptr.vmem [resolvable:$true] %s259
          %265 = dma.hbm_to_vmem [thread:$0]  %s258, 2048, %s260, %s247, 128, 128, 8
        $region40: #{tpu_custom_call.1} parent=35 // pred_fallthru
          _
      $region36: #{tpu_custom_call.1} parent=5 // pred_fallthru
        _
      %p266 = scmp.le.s32.totalorder 1, %s18
      %p267 = scmp.lt.s32.totalorder %s18, 3
      %p268 = pnand %p266, %p267
      %p269 = pneg %p268
      // Predicated region
      $region41: #{tpu_custom_call.1} parent=5 // pred_check
        _
      $region42: #{tpu_custom_call.1} parent=5 // pred_check_branch
        %271 = sbr.rel (%p268) target = $region44
      $region43: #{tpu_custom_call.1} parent=5 // pred_region
        %s272 = ssub.s32 %s18, 1
        %s273 = sand.u32 %s45, 1
        %s274 = scalar_lea.sflag [#allocation6], %s273
        %s275 = sand.u32 %s45, 1
        %s276 = smul.addr %s275, 128
        %s277 = scalar_lea.vmem [#allocation5], %s276
        // Predicated region
        $region45: #{tpu_custom_call.1} parent=43 // pred_check
          %p278 = pneg %p58
        $region46: #{tpu_custom_call.1} parent=43 // pred_check_branch
          %280 = sbr.rel (%p278) target = $region48
        $region47: #{tpu_custom_call.1} parent=43 // pred_region
          %281 = dma.done %s274, 2048
        $region48: #{tpu_custom_call.1} parent=43 // pred_fallthru
          _
        // Predicated region
        $region49: #{tpu_custom_call.1} parent=43 // pred_check
          %p282 = pneg %p79
        $region50: #{tpu_custom_call.1} parent=43 // pred_check_branch
          %284 = sbr.rel (%p282) target = $region52
        $region51: #{tpu_custom_call.1} parent=43 // pred_region
          %285 = dma.done [#allocation8], 2048
        $region52: #{tpu_custom_call.1} parent=43 // pred_fallthru
          _
        // Predicated region
        $region53: #{tpu_custom_call.1} parent=43 // pred_check
          %p286 = pneg %p100
        $region54: #{tpu_custom_call.1} parent=43 // pred_check_branch
          %288 = sbr.rel (%p286) target = $region56
        $region55: #{tpu_custom_call.1} parent=43 // pred_region
          %289 = dma.done [#allocation8], 2048
        $region56: #{tpu_custom_call.1} parent=43 // pred_fallthru
          _
        %s290 = sand.u32 %s45, 1
        %s291 = scalar_lea.sflag [#allocation6], %s290
        %s292 = sand.u32 %s45, 1
        %s293 = smul.addr %s292, 128
        %s294 = scalar_lea.vmem [#allocation5], %s293
        %p295 = pneg %p58
        %p296 = pneg %p55
        %p297 = pneg %p79
        %p298 = pneg %p76
        %p299 = pneg %p100
        %p300 = pneg %p97
        %p301 = pneg %p121
        %p302 = pneg %p118
        %p303 = pneg %p142
        %p304 = pneg %p139
        %p305 = pneg %p163
        %p306 = pneg %p160
        %p307 = pneg %p189
        %p308 = pneg %p186
        %p309 = scmp.lt.s32.totalorder %s27, 1
        %s310 = scalar_select %p309, %s27, 1
        %s311 = scalar_lea.vmem %s6, %s310
        %s312 = sadd.s32 %s27, %s28
        %s313 = smul.u32 4, %s312
        %p314 = scmp.lt.s32.totalorder %s27, 1
        %s315 = scalar_select %p314, %s27, 1
        %s316 = scalar_lea.vmem %s6, %s315
        %p317 = scmp.eq.s32.totalorder %s28, 0
        // Predicated region
        $region57: #{tpu_custom_call.1} parent=43 // pred_check
          %p318 = pneg %p317
        $region58: #{tpu_custom_call.1} parent=43 // pred_check_branch
          %320 = sbr.rel (%p318) target = $region60
        $region59: #{tpu_custom_call.1} parent=43 // pred_region
          %vm321 = vcmask 523264
          %322 = vst.msk [vmem:[#allocation2] sm:$0xff] %vm321, -inf
          %323 = vst.msk [vmem:[#allocation2 + $0x8] sm:$0xff] %vm321, -inf
          %324 = vst.msk [vmem:[#allocation2 + $0x10] sm:$0xff] %vm321, -inf
          %325 = vst.msk [vmem:[#allocation2 + $0x18] sm:$0xff] %vm321, -inf
          %326 = vst.msk [vmem:[#allocation3] sm:$0xff] %vm321, 0.0
          %327 = vst.msk [vmem:[#allocation3 + $0x8] sm:$0xff] %vm321, 0.0
          %328 = vst.msk [vmem:[#allocation3 + $0x10] sm:$0xff] %vm321, 0.0
          %329 = vst.msk [vmem:[#allocation3 + $0x18] sm:$0xff] %vm321, 0.0
        $region60: #{tpu_custom_call.1} parent=43 // pred_fallthru
          _
        %v330 = vld [vmem:[%s277] sm:$0xff]
        %v331 = vld [vmem:[%s277 + $0x8] sm:$0xff]
        %v332 = vld [vmem:[%s277 + $0x10] sm:$0xff]
        %v333 = vld [vmem:[%s277 + $0x18] sm:$0xff]
        %v334 = vld [vmem:[#allocation2] sm:$0xff]
        %v335 = vld [vmem:[#allocation2 + $0x8] sm:$0xff]
        %v336 = vld [vmem:[#allocation2 + $0x10] sm:$0xff]
        %v337 = vld [vmem:[#allocation2 + $0x18] sm:$0xff]
        %v338 = vmax.f32 %v334, %v330
        %v339 = vmax.f32 %v335, %v331
        %v340 = vmax.f32 %v336, %v332
        %v341 = vmax.f32 %v337, %v333
        %vm342 = vcmask 523264
        %343 = vst.msk [vmem:[#allocation2] sm:$0xff] %vm342, %v338
        %344 = vst.msk [vmem:[#allocation2 + $0x8] sm:$0xff] %vm342, %v339
        %345 = vst.msk [vmem:[#allocation2 + $0x10] sm:$0xff] %vm342, %v340
        %346 = vst.msk [vmem:[#allocation2 + $0x18] sm:$0xff] %vm342, %v341
        %v347 = vld [vmem:[#allocation3] sm:$0xff]
        %v348 = vld [vmem:[#allocation3 + $0x8] sm:$0xff]
        %v349 = vld [vmem:[#allocation3 + $0x10] sm:$0xff]
        %v350 = vld [vmem:[#allocation3 + $0x18] sm:$0xff]
        %v351 = vadd.f32 %v347, %v330
        %v352 = vadd.f32 %v348, %v331
        %v353 = vadd.f32 %v349, %v332
        %v354 = vadd.f32 %v350, %v333
        %355 = vst.msk [vmem:[#allocation3] sm:$0xff] %vm342, %v351
        %356 = vst.msk [vmem:[#allocation3 + $0x8] sm:$0xff] %vm342, %v352
        %357 = vst.msk [vmem:[#allocation3 + $0x10] sm:$0xff] %vm342, %v353
        %358 = vst.msk [vmem:[#allocation3 + $0x18] sm:$0xff] %vm342, %v354
        %s359 = scalar_lea.vmem %s277, 32 [#allocation5]
        %v360 = vld [vmem:[%s359] sm:$0xff]
        %v361 = vld [vmem:[%s359 + $0x8] sm:$0xff]
        %v362 = vld [vmem:[%s359 + $0x10] sm:$0xff]
        %v363 = vld [vmem:[%s359 + $0x18] sm:$0xff]
        %v364 = vld [vmem:[#allocation2] sm:$0xff]
        %v365 = vld [vmem:[#allocation2 + $0x8] sm:$0xff]
        %v366 = vld [vmem:[#allocation2 + $0x10] sm:$0xff]
        %v367 = vld [vmem:[#allocation2 + $0x18] sm:$0xff]
        %v368 = vmax.f32 %v364, %v360
        %v369 = vmax.f32 %v365, %v361
        %v370 = vmax.f32 %v366, %v362
        %v371 = vmax.f32 %v367, %v363
        %372 = vst.msk [vmem:[#allocation2] sm:$0xff] %vm342, %v368
        %373 = vst.msk [vmem:[#allocation2 + $0x8] sm:$0xff] %vm342, %v369
        %374 = vst.msk [vmem:[#allocation2 + $0x10] sm:$0xff] %vm342, %v370
        %375 = vst.msk [vmem:[#allocation2 + $0x18] sm:$0xff] %vm342, %v371
        %v376 = vld [vmem:[#allocation3] sm:$0xff]
        %v377 = vld [vmem:[#allocation3 + $0x8] sm:$0xff]
        %v378 = vld [vmem:[#allocation3 + $0x10] sm:$0xff]
        %v379 = vld [vmem:[#allocation3 + $0x18] sm:$0xff]
        %v380 = vadd.f32 %v376, %v360
        %v381 = vadd.f32 %v377, %v361
        %v382 = vadd.f32 %v378, %v362
        %v383 = vadd.f32 %v379, %v363
        %384 = vst.msk [vmem:[#allocation3] sm:$0xff] %vm342, %v380
        %385 = vst.msk [vmem:[#allocation3 + $0x8] sm:$0xff] %vm342, %v381
        %386 = vst.msk [vmem:[#allocation3 + $0x10] sm:$0xff] %vm342, %v382
        %387 = vst.msk [vmem:[#allocation3 + $0x18] sm:$0xff] %vm342, %v383
        %s388 = scalar_lea.vmem %s277, 64 [#allocation5]
        %v389 = vld [vmem:[%s388] sm:$0xff]
        %v390 = vld [vmem:[%s388 + $0x8] sm:$0xff]
        %v391 = vld [vmem:[%s388 + $0x10] sm:$0xff]
        %v392 = vld [vmem:[%s388 + $0x18] sm:$0xff]
        %v393 = vld [vmem:[#allocation2] sm:$0xff]
        %v394 = vld [vmem:[#allocation2 + $0x8] sm:$0xff]
        %v395 = vld [vmem:[#allocation2 + $0x10] sm:$0xff]
        %v396 = vld [vmem:[#allocation2 + $0x18] sm:$0xff]
        %v397 = vmax.f32 %v393, %v389
        %v398 = vmax.f32 %v394, %v390
        %v399 = vmax.f32 %v395, %v391
        %v400 = vmax.f32 %v396, %v392
        %401 = vst.msk [vmem:[#allocation2] sm:$0xff] %vm342, %v397
        %402 = vst.msk [vmem:[#allocation2 + $0x8] sm:$0xff] %vm342, %v398
        %403 = vst.msk [vmem:[#allocation2 + $0x10] sm:$0xff] %vm342, %v399
        %404 = vst.msk [vmem:[#allocation2 + $0x18] sm:$0xff] %vm342, %v400
        %v405 = vld [vmem:[#allocation3] sm:$0xff]
        %v406 = vld [vmem:[#allocation3 + $0x8] sm:$0xff]
        %v407 = vld [vmem:[#allocation3 + $0x10] sm:$0xff]
        %v408 = vld [vmem:[#allocation3 + $0x18] sm:$0xff]
        %v409 = vadd.f32 %v405, %v389
        %v410 = vadd.f32 %v406, %v390
        %v411 = vadd.f32 %v407, %v391
        %v412 = vadd.f32 %v408, %v392
        %413 = vst.msk [vmem:[#allocation3] sm:$0xff] %vm342, %v409
        %414 = vst.msk [vmem:[#allocation3 + $0x8] sm:$0xff] %vm342, %v410
        %415 = vst.msk [vmem:[#allocation3 + $0x10] sm:$0xff] %vm342, %v411
        %416 = vst.msk [vmem:[#allocation3 + $0x18] sm:$0xff] %vm342, %v412
        %s417 = scalar_lea.vmem %s277, 96 [#allocation5]
        %v418 = vld [vmem:[%s417] sm:$0xff]
        %v419 = vld [vmem:[%s417 + $0x8] sm:$0xff]
        %v420 = vld [vmem:[%s417 + $0x10] sm:$0xff]
        %v421 = vld [vmem:[%s417 + $0x18] sm:$0xff]
        %v422 = vld [vmem:[#allocation2] sm:$0xff]
        %v423 = vld [vmem:[#allocation2 + $0x8] sm:$0xff]
        %v424 = vld [vmem:[#allocation2 + $0x10] sm:$0xff]
        %v425 = vld [vmem:[#allocation2 + $0x18] sm:$0xff]
        %v426 = vmax.f32 %v422, %v418
        %v427 = vmax.f32 %v423, %v419
        %v428 = vmax.f32 %v424, %v420
        %v429 = vmax.f32 %v425, %v421
        %430 = vst.msk [vmem:[#allocation2] sm:$0xff] %vm342, %v426
        %431 = vst.msk [vmem:[#allocation2 + $0x8] sm:$0xff] %vm342, %v427
        %432 = vst.msk [vmem:[#allocation2 + $0x10] sm:$0xff] %vm342, %v428
        %433 = vst.msk [vmem:[#allocation2 + $0x18] sm:$0xff] %vm342, %v429
        %v434 = vld [vmem:[#allocation3] sm:$0xff]
        %v435 = vld [vmem:[#allocation3 + $0x8] sm:$0xff]
        %v436 = vld [vmem:[#allocation3 + $0x10] sm:$0xff]
        %v437 = vld [vmem:[#allocation3 + $0x18] sm:$0xff]
        %v438 = vadd.f32 %v434, %v418
        %v439 = vadd.f32 %v435, %v419
        %v440 = vadd.f32 %v436, %v420
        %v441 = vadd.f32 %v437, %v421
        %442 = vst.msk [vmem:[#allocation3] sm:$0xff] %vm342, %v438
        %443 = vst.msk [vmem:[#allocation3 + $0x8] sm:$0xff] %vm342, %v439
        %444 = vst.msk [vmem:[#allocation3 + $0x10] sm:$0xff] %vm342, %v440
        %445 = vst.msk [vmem:[#allocation3 + $0x18] sm:$0xff] %vm342, %v441
        // Predicated region
        $region61: #{tpu_custom_call.1} parent=43 // pred_check
          %p446 = pneg %p317
        $region62: #{tpu_custom_call.1} parent=43 // pred_check_branch
          %448 = sbr.rel (%p446) target = $region64
        $region63: #{tpu_custom_call.1} parent=43 // pred_region
          %v449 = vld [vmem:[#allocation2] sm:$0xff]
          %v450 = vld [vmem:[#allocation2 + $0x8] sm:$0xff]
          %v451 = vld [vmem:[#allocation2 + $0x10] sm:$0xff]
          %v452 = vld [vmem:[#allocation2 + $0x18] sm:$0xff]
          %v453 = vsel %vm342, %v449, -inf
          %454 = vmax.xlane.f32.xlu0 %v453
          %v455 = vpop.xlane.xlu0 %454
          %v456 = vsel %vm342, %v450, -inf
          %457 = vmax.xlane.f32.xlu0 %v456
          %v458 = vpop.xlane.xlu0 %457
          %v459 = vsel %vm342, %v451, -inf
          %460 = vmax.xlane.f32.xlu0 %v459
          %v461 = vpop.xlane.xlu0 %460
          %v462 = vsel %vm342, %v452, -inf
          %463 = vmax.xlane.f32.xlu0 %v462
          %v464 = vpop.xlane.xlu0 %463
          %v465 = vld [vmem:[#allocation3] sm:$0xff]
          %v466 = vld [vmem:[#allocation3 + $0x8] sm:$0xff]
          %v467 = vld [vmem:[#allocation3 + $0x10] sm:$0xff]
          %v468 = vld [vmem:[#allocation3 + $0x18] sm:$0xff]
          %v469 = vsel %vm342, %v465, 0.0
          %470 = vadd.xlane.f32.xlu0 %v469
          %v471 = vpop.xlane.xlu0 %470
          %v472 = vsel %vm342, %v466, 0.0
          %473 = vadd.xlane.f32.xlu0 %v472
          %v474 = vpop.xlane.xlu0 %473
          %v475 = vsel %vm342, %v467, 0.0
          %476 = vadd.xlane.f32.xlu0 %v475
          %v477 = vpop.xlane.xlu0 %476
          %v478 = vsel %vm342, %v468, 0.0
          %479 = vadd.xlane.f32.xlu0 %v478
          %v480 = vpop.xlane.xlu0 %479
          %v481 = vmul.f32 %v471, 0.00390625
          %v482 = vmul.f32 %v474, 0.00390625
          %v483 = vmul.f32 %v477, 0.00390625
          %v484 = vmul.f32 %v480, 0.00390625
          %v485 = vld [vmem:[#allocation7] sm:$0xff]
          %v486 = vld [vmem:[#allocation7 + $0x8] sm:$0xff]
          %v487 = vld [vmem:[#allocation7 + $0x10] sm:$0xff]
          %v488 = vld [vmem:[#allocation7 + $0x18] sm:$0xff]
          %v489 = vld [vmem:[#allocation7 + $0x20] sm:$0xff]
          %v490 = vld [vmem:[#allocation7 + $0x28] sm:$0xff]
          %v491 = vld [vmem:[#allocation7 + $0x30] sm:$0xff]
          %v492 = vld [vmem:[#allocation7 + $0x38] sm:$0xff]
          %v493 = vld [vmem:[#allocation7 + $0x40] sm:$0xff]
          %v494 = vld [vmem:[#allocation7 + $0x48] sm:$0xff]
          %v495 = vld [vmem:[#allocation7 + $0x50] sm:$0xff]
          %v496 = vld [vmem:[#allocation7 + $0x58] sm:$0xff]
          %v497 = vld [vmem:[#allocation7 + $0x60] sm:$0xff]
          %v498 = vld [vmem:[#allocation7 + $0x68] sm:$0xff]
          %v499 = vld [vmem:[#allocation7 + $0x70] sm:$0xff]
          %v500 = vld [vmem:[#allocation7 + $0x78] sm:$0xff]
          %v501 = vld [vmem:[#allocation9] sm:$0xff]
          %v502 = vld [vmem:[#allocation9 + $0x8] sm:$0xff]
          %v503 = vld [vmem:[#allocation9 + $0x10] sm:$0xff]
          %v504 = vld [vmem:[#allocation9 + $0x18] sm:$0xff]
          %v505 = vld [vmem:[#allocation9 + $0x20] sm:$0xff]
          %v506 = vld [vmem:[#allocation9 + $0x28] sm:$0xff]
          %v507 = vld [vmem:[#allocation9 + $0x30] sm:$0xff]
          %v508 = vld [vmem:[#allocation9 + $0x38] sm:$0xff]
          %v509 = vld [vmem:[#allocation9 + $0x40] sm:$0xff]
          %v510 = vld [vmem:[#allocation9 + $0x48] sm:$0xff]
          %v511 = vld [vmem:[#allocation9 + $0x50] sm:$0xff]
          %v512 = vld [vmem:[#allocation9 + $0x58] sm:$0xff]
          %v513 = vld [vmem:[#allocation9 + $0x60] sm:$0xff]
          %v514 = vld [vmem:[#allocation9 + $0x68] sm:$0xff]
          %v515 = vld [vmem:[#allocation9 + $0x70] sm:$0xff]
          %v516 = vld [vmem:[#allocation9 + $0x78] sm:$0xff]
          %v521 = vlaneseq
          %v522 = vand.u32 %v521, 127
          %v523 = vlaneseq
          %v524 = vshrl.u32 %v523, 7
          %v525 = vsub.s32 %v522, %v524
          %v526 = vrot.slane %v481, %v525
          %v527 = vadd.s32 %v522, 4294967288
          %v528 = vlaneseq
          %v529 = vshrl.u32 %v528, 7
          %v530 = vsub.s32 %v527, %v529
          %v531 = vrot.slane %v482, %v530
          %vm532 = vcmask 130112
          %v533 = vsel %vm532, %v531, %v526
          %v534 = vadd.s32 %v522, 4294967280
          %v535 = vlaneseq
          %v536 = vshrl.u32 %v535, 7
          %v537 = vsub.s32 %v534, %v536
          %v538 = vrot.slane %v483, %v537
          %vm539 = vcmask 195712
          %v540 = vsel %vm539, %v538, %v533
          %v541 = vadd.s32 %v522, 4294967272
          %v542 = vlaneseq
          %v543 = vshrl.u32 %v542, 7
          %v544 = vsub.s32 %v541, %v543
          %v545 = vrot.slane %v484, %v544
          %vm546 = vcmask 261312
          %v547 = vsel %vm546, %v545, %v540
          %vm548 = vcmask 261120
          %v549 = vsel %vm548, %v547, 0
          %551 = vmatprep.subr.mxu0 %v502
          %552 = vmatpush1.msra.mxu0 %v501
          %553 = vmatprep.subr.mxu0 %v506
          %554 = vmatpush1.msra.mxu0 %v505
          %555 = vmatprep.subr.mxu0 %v510
          %556 = vmatpush1.msra.mxu0 %v509
          %557 = vmatprep.subr.mxu0 %v514
          %558 = vmatpush1.msra.mxu0 %v513
          %559 = vmatprep.subr.mxu0 0.0
          %560 = vmatpush1.msra.mxu0 0.0
          %561 = vmatprep.subr.mxu0 0.0
          %562 = vmatpush1.msra.mxu0 0.0
          %563 = vmatprep.subr.mxu0 0.0
          %564 = vmatpush1.msra.mxu0 0.0
          %565 = vmatprep.subr.mxu0 0.0
          %566 = vmatpush1.msra.mxu0 0.0
          %567 = vmatprep.subr.mxu0 0.0
          %568 = vmatpush1.msra.mxu0 0.0
          %569 = vmatprep.subr.mxu0 0.0
          %570 = vmatpush1.msra.mxu0 0.0
          %571 = vmatprep.subr.mxu0 0.0
          %572 = vmatpush1.msra.mxu0 0.0
          %573 = vmatprep.subr.mxu0 0.0
          %574 = vmatpush1.msra.mxu0 0.0
          %575 = vmatprep.subr.mxu0 0.0
          %576 = vmatpush1.msra.mxu0 0.0
          %577 = vmatprep.subr.mxu0 0.0
          %578 = vmatpush1.msra.mxu0 0.0
          %579 = vmatprep.subr.mxu0 0.0
          %580 = vmatpush1.msra.mxu0 0.0
          %581 = vmatprep.subr.mxu0 0.0
          %582 = vmatpush1.msra.mxu0 0.0
          %583 = vmatprep.subr.mxu0 0.0
          %584 = vmatpush1.msra.mxu0 0.0
          %585 = vmatprep.subr.mxu0 0.0
          %586 = vmatpush1.msra.mxu0 0.0
          %587 = vmatprep.subr.mxu0 0.0
          %588 = vmatpush1.msra.mxu0 0.0
          %589 = vmatprep.subr.mxu0 0.0
          %590 = vmatpush1.msra.mxu0 0.0
          %591 = vmatprep.subr.mxu0 0.0
          %592 = vmatpush1.msra.mxu0 0.0
          %593 = vmatprep.subr.mxu0 0.0
          %594 = vmatpush1.msra.mxu0 0.0
          %595 = vmatprep.subr.mxu0 0.0
          %596 = vmatpush1.msra.mxu0 0.0
          %597 = vmatprep.subr.mxu0 0.0
          %598 = vmatpush1.msra.mxu0 0.0
          %599 = vmatprep.subr.mxu0 0.0
          %600 = vmatpush1.msra.mxu0 0.0
          %601 = vmatprep.subr.mxu0 0.0
          %602 = vmatpush1.msra.mxu0 0.0
          %603 = vmatprep.subr.mxu0 0.0
          %604 = vmatpush1.msra.mxu0 0.0
          %605 = vmatprep.subr.mxu0 0.0
          %606 = vmatpush1.msra.mxu0 0.0
          %607 = vmatprep.subr.mxu0 0.0
          %608 = vmatpush1.msra.mxu0 0.0
          %609 = vmatprep.subr.mxu0 0.0
          %610 = vmatpush1.msra.mxu0 0.0
          %611 = vmatprep.subr.mxu0 0.0
          %612 = vmatpush1.msra.mxu0 0.0
          %613 = vmatprep.subr.mxu0 0.0
          %614 = vmatpush1.msra.mxu0 0.0
          %615 = vmatprep.mubr.f32.mxu0 0.0
          %616 = vmatmul.mubr.f32.gmra.mrb[0].mxu0 %v549
          %v617 = vpop.f32.mrb[0].mxu0
          %v618 = vadd.f32 0.0, %v617
          %v619 = vpop.f32.mrb[0].mxu0
          %v620 = vadd.f32 0.0, %v619
          %621 = vdwg.mxu0
          %622 = vmatprep.subr.mxu0 %v504
          %623 = vmatpush1.msra.mxu0 %v503
          %624 = vmatprep.subr.mxu0 %v508
          %625 = vmatpush1.msra.mxu0 %v507
          %626 = vmatprep.subr.mxu0 %v512
          %627 = vmatpush1.msra.mxu0 %v511
          %628 = vmatprep.subr.mxu0 %v516
          %629 = vmatpush1.msra.mxu0 %v515
          %630 = vmatprep.subr.mxu0 0.0
          %631 = vmatpush1.msra.mxu0 0.0
          %632 = vmatprep.subr.mxu0 0.0
          %633 = vmatpush1.msra.mxu0 0.0
          %634 = vmatprep.subr.mxu0 0.0
          %635 = vmatpush1.msra.mxu0 0.0
          %636 = vmatprep.subr.mxu0 0.0
          %637 = vmatpush1.msra.mxu0 0.0
          %638 = vmatprep.subr.mxu0 0.0
          %639 = vmatpush1.msra.mxu0 0.0
          %640 = vmatprep.subr.mxu0 0.0
          %641 = vmatpush1.msra.mxu0 0.0
          %642 = vmatprep.subr.mxu0 0.0
          %643 = vmatpush1.msra.mxu0 0.0
          %644 = vmatprep.subr.mxu0 0.0
          %645 = vmatpush1.msra.mxu0 0.0
          %646 = vmatprep.subr.mxu0 0.0
          %647 = vmatpush1.msra.mxu0 0.0
          %648 = vmatprep.subr.mxu0 0.0
          %649 = vmatpush1.msra.mxu0 0.0
          %650 = vmatprep.subr.mxu0 0.0
          %651 = vmatpush1.msra.mxu0 0.0
          %652 = vmatprep.subr.mxu0 0.0
          %653 = vmatpush1.msra.mxu0 0.0
          %654 = vmatprep.subr.mxu0 0.0
          %655 = vmatpush1.msra.mxu0 0.0
          %656 = vmatprep.subr.mxu0 0.0
          %657 = vmatpush1.msra.mxu0 0.0
          %658 = vmatprep.subr.mxu0 0.0
          %659 = vmatpush1.msra.mxu0 0.0
          %660 = vmatprep.subr.mxu0 0.0
          %661 = vmatpush1.msra.mxu0 0.0
          %662 = vmatprep.subr.mxu0 0.0
          %663 = vmatpush1.msra.mxu0 0.0
          %664 = vmatprep.subr.mxu0 0.0
          %665 = vmatpush1.msra.mxu0 0.0
          %666 = vmatprep.subr.mxu0 0.0
          %667 = vmatpush1.msra.mxu0 0.0
          %668 = vmatprep.subr.mxu0 0.0
          %669 = vmatpush1.msra.mxu0 0.0
          %670 = vmatprep.subr.mxu0 0.0
          %671 = vmatpush1.msra.mxu0 0.0
          %672 = vmatprep.subr.mxu0 0.0
          %673 = vmatpush1.msra.mxu0 0.0
          %674 = vmatprep.subr.mxu0 0.0
          %675 = vmatpush1.msra.mxu0 0.0
          %676 = vmatprep.subr.mxu0 0.0
          %677 = vmatpush1.msra.mxu0 0.0
          %678 = vmatprep.subr.mxu0 0.0
          %679 = vmatpush1.msra.mxu0 0.0
          %680 = vmatprep.subr.mxu0 0.0
          %681 = vmatpush1.msra.mxu0 0.0
          %682 = vmatprep.subr.mxu0 0.0
          %683 = vmatpush1.msra.mxu0 0.0
          %684 = vmatprep.subr.mxu0 0.0
          %685 = vmatpush1.msra.mxu0 0.0
          %686 = vmatprep.mubr.f32.mxu0 0.0
          %687 = vmatmul.mubr.f32.gmra.mrb[0].mxu0 %v549
          %v688 = vpop.f32.mrb[0].mxu0
          %v689 = vadd.f32 0.0, %v688
          %v690 = vpop.f32.mrb[0].mxu0
          %v691 = vadd.f32 0.0, %v690
          %692 = vdwg.mxu0
          %v697 = vlaneseq
          %v698 = vshrl.u32 %v697, 7
          %v699 = vsub.s32 %v522, %v698
          %v700 = vrot.slane %v455, %v699
          %v701 = vlaneseq
          %v702 = vshrl.u32 %v701, 7
          %v703 = vsub.s32 %v527, %v702
          %v704 = vrot.slane %v458, %v703
          %v705 = vsel %vm532, %v704, %v700
          %v706 = vlaneseq
          %v707 = vshrl.u32 %v706, 7
          %v708 = vsub.s32 %v534, %v707
          %v709 = vrot.slane %v461, %v708
          %v710 = vsel %vm539, %v709, %v705
          %v711 = vlaneseq
          %v712 = vshrl.u32 %v711, 7
          %v713 = vsub.s32 %v541, %v712
          %v714 = vrot.slane %v464, %v713
          %v715 = vsel %vm546, %v714, %v710
          %v716 = vsel %vm548, %v715, 0
          %718 = vmatprep.subr.mxu0 %v486
          %719 = vmatpush1.msra.mxu0 %v485
          %720 = vmatprep.subr.mxu0 %v490
          %721 = vmatpush1.msra.mxu0 %v489
          %722 = vmatprep.subr.mxu0 %v494
          %723 = vmatpush1.msra.mxu0 %v493
          %724 = vmatprep.subr.mxu0 %v498
          %725 = vmatpush1.msra.mxu0 %v497
          %726 = vmatprep.subr.mxu0 0.0
          %727 = vmatpush1.msra.mxu0 0.0
          %728 = vmatprep.subr.mxu0 0.0
          %729 = vmatpush1.msra.mxu0 0.0
          %730 = vmatprep.subr.mxu0 0.0
          %731 = vmatpush1.msra.mxu0 0.0
          %732 = vmatprep.subr.mxu0 0.0
          %733 = vmatpush1.msra.mxu0 0.0
          %734 = vmatprep.subr.mxu0 0.0
          %735 = vmatpush1.msra.mxu0 0.0
          %736 = vmatprep.subr.mxu0 0.0
          %737 = vmatpush1.msra.mxu0 0.0
          %738 = vmatprep.subr.mxu0 0.0
          %739 = vmatpush1.msra.mxu0 0.0
          %740 = vmatprep.subr.mxu0 0.0
          %741 = vmatpush1.msra.mxu0 0.0
          %742 = vmatprep.subr.mxu0 0.0
          %743 = vmatpush1.msra.mxu0 0.0
          %744 = vmatprep.subr.mxu0 0.0
          %745 = vmatpush1.msra.mxu0 0.0
          %746 = vmatprep.subr.mxu0 0.0
          %747 = vmatpush1.msra.mxu0 0.0
          %748 = vmatprep.subr.mxu0 0.0
          %749 = vmatpush1.msra.mxu0 0.0
          %750 = vmatprep.subr.mxu0 0.0
          %751 = vmatpush1.msra.mxu0 0.0
          %752 = vmatprep.subr.mxu0 0.0
          %753 = vmatpush1.msra.mxu0 0.0
          %754 = vmatprep.subr.mxu0 0.0
          %755 = vmatpush1.msra.mxu0 0.0
          %756 = vmatprep.subr.mxu0 0.0
          %757 = vmatpush1.msra.mxu0 0.0
          %758 = vmatprep.subr.mxu0 0.0
          %759 = vmatpush1.msra.mxu0 0.0
          %760 = vmatprep.subr.mxu0 0.0
          %761 = vmatpush1.msra.mxu0 0.0
          %762 = vmatprep.subr.mxu0 0.0
          %763 = vmatpush1.msra.mxu0 0.0
          %764 = vmatprep.subr.mxu0 0.0
          %765 = vmatpush1.msra.mxu0 0.0
          %766 = vmatprep.subr.mxu0 0.0
          %767 = vmatpush1.msra.mxu0 0.0
          %768 = vmatprep.subr.mxu0 0.0
          %769 = vmatpush1.msra.mxu0 0.0
          %770 = vmatprep.subr.mxu0 0.0
          %771 = vmatpush1.msra.mxu0 0.0
          %772 = vmatprep.subr.mxu0 0.0
          %773 = vmatpush1.msra.mxu0 0.0
          %774 = vmatprep.subr.mxu0 0.0
          %775 = vmatpush1.msra.mxu0 0.0
          %776 = vmatprep.subr.mxu0 0.0
          %777 = vmatpush1.msra.mxu0 0.0
          %778 = vmatprep.subr.mxu0 0.0
          %779 = vmatpush1.msra.mxu0 0.0
          %780 = vmatprep.subr.mxu0 0.0
          %781 = vmatpush1.msra.mxu0 0.0
          %782 = vmatprep.mubr.f32.mxu0 0.0
          %783 = vmatmul.mubr.f32.gmra.mrb[0].mxu0 %v716
          %v784 = vpop.f32.mrb[0].mxu0
          %v785 = vadd.f32 %v618, %v784
          %v786 = vpop.f32.mrb[0].mxu0
          %v787 = vadd.f32 %v620, %v786
          %788 = vdwg.mxu0
          %789 = vmatprep.subr.mxu0 %v488
          %790 = vmatpush1.msra.mxu0 %v487
          %791 = vmatprep.subr.mxu0 %v492
          %792 = vmatpush1.msra.mxu0 %v491
          %793 = vmatprep.subr.mxu0 %v496
          %794 = vmatpush1.msra.mxu0 %v495
          %795 = vmatprep.subr.mxu0 %v500
          %796 = vmatpush1.msra.mxu0 %v499
          %797 = vmatprep.subr.mxu0 0.0
          %798 = vmatpush1.msra.mxu0 0.0
          %799 = vmatprep.subr.mxu0 0.0
          %800 = vmatpush1.msra.mxu0 0.0
          %801 = vmatprep.subr.mxu0 0.0
          %802 = vmatpush1.msra.mxu0 0.0
          %803 = vmatprep.subr.mxu0 0.0
          %804 = vmatpush1.msra.mxu0 0.0
          %805 = vmatprep.subr.mxu0 0.0
          %806 = vmatpush1.msra.mxu0 0.0
          %807 = vmatprep.subr.mxu0 0.0
          %808 = vmatpush1.msra.mxu0 0.0
          %809 = vmatprep.subr.mxu0 0.0
          %810 = vmatpush1.msra.mxu0 0.0
          %811 = vmatprep.subr.mxu0 0.0
          %812 = vmatpush1.msra.mxu0 0.0
          %813 = vmatprep.subr.mxu0 0.0
          %814 = vmatpush1.msra.mxu0 0.0
          %815 = vmatprep.subr.mxu0 0.0
          %816 = vmatpush1.msra.mxu0 0.0
          %817 = vmatprep.subr.mxu0 0.0
          %818 = vmatpush1.msra.mxu0 0.0
          %819 = vmatprep.subr.mxu0 0.0
          %820 = vmatpush1.msra.mxu0 0.0
          %821 = vmatprep.subr.mxu0 0.0
          %822 = vmatpush1.msra.mxu0 0.0
          %823 = vmatprep.subr.mxu0 0.0
          %824 = vmatpush1.msra.mxu0 0.0
          %825 = vmatprep.subr.mxu0 0.0
          %826 = vmatpush1.msra.mxu0 0.0
          %827 = vmatprep.subr.mxu0 0.0
          %828 = vmatpush1.msra.mxu0 0.0
          %829 = vmatprep.subr.mxu0 0.0
          %830 = vmatpush1.msra.mxu0 0.0
          %831 = vmatprep.subr.mxu0 0.0
          %832 = vmatpush1.msra.mxu0 0.0
          %833 = vmatprep.subr.mxu0 0.0
          %834 = vmatpush1.msra.mxu0 0.0
          %835 = vmatprep.subr.mxu0 0.0
          %836 = vmatpush1.msra.mxu0 0.0
          %837 = vmatprep.subr.mxu0 0.0
          %838 = vmatpush1.msra.mxu0 0.0
          %839 = vmatprep.subr.mxu0 0.0
          %840 = vmatpush1.msra.mxu0 0.0
          %841 = vmatprep.subr.mxu0 0.0
          %842 = vmatpush1.msra.mxu0 0.0
          %843 = vmatprep.subr.mxu0 0.0
          %844 = vmatpush1.msra.mxu0 0.0
          %845 = vmatprep.subr.mxu0 0.0
          %846 = vmatpush1.msra.mxu0 0.0
          %847 = vmatprep.subr.mxu0 0.0
          %848 = vmatpush1.msra.mxu0 0.0
          %849 = vmatprep.subr.mxu0 0.0
          %850 = vmatpush1.msra.mxu0 0.0
          %851 = vmatprep.subr.mxu0 0.0
          %852 = vmatpush1.msra.mxu0 0.0
          %853 = vmatprep.mubr.f32.mxu0 0.0
          %854 = vmatmul.mubr.f32.gmra.mrb[0].mxu0 %v716
          %v855 = vpop.f32.mrb[0].mxu0
          %v856 = vadd.f32 %v689, %v855
          %v857 = vpop.f32.mrb[0].mxu0
          %v858 = vadd.f32 %v691, %v857
          %859 = vdwg.mxu0
          %v860 = vld [vmem:[%s3] sm:$0xf]
          %v862 = vlaneseq
          %v863 = vshrl.u32 %v862, 7
          %v864 = vsub.s32 0, %v863
          %v865 = vrot.slane %v860, %v864
          %v866 = vlaneseq
          %v867 = vshrl.u32 %v866, 7
          %v868 = vsub.s32 1, %v867
          %v869 = vrot.slane %v860, %v868
          %v870 = vlaneseq
          %v871 = vshrl.u32 %v870, 7
          %v872 = vsub.s32 2, %v871
          %v873 = vrot.slane %v860, %v872
          %v874 = vlaneseq
          %v875 = vshrl.u32 %v874, 7
          %v876 = vsub.s32 3, %v875
          %v877 = vrot.slane %v860, %v876
          %v882 = vadd.f32 %v785, %v865
          %v883 = vadd.f32 %v787, %v869
          %v884 = vadd.f32 %v856, %v873
          %v885 = vadd.f32 %v858, %v877
          %v886 = vmax.f32 %v882, 0.0
          %v887 = vmax.f32 %v883, 0.0
          %v888 = vmax.f32 %v884, 0.0
          %v889 = vmax.f32 %v885, 0.0
          %vm890 = vcmp.ne.f32.partialorder %v882, %v882
          %vm891 = vcmp.ne.f32.partialorder %v883, %v883
          %vm892 = vcmp.ne.f32.partialorder %v884, %v884
          %vm893 = vcmp.ne.f32.partialorder %v885, %v885
          %v894 = vadd.f32 %v882, 0.0
          %v895 = vadd.f32 %v883, 0.0
          %v896 = vadd.f32 %v884, 0.0
          %v897 = vadd.f32 %v885, 0.0
          %v898 = vand.u32 2147483647, %v882
          %v899 = vand.u32 2147483647, %v883
          %v900 = vand.u32 2147483647, %v884
          %v901 = vand.u32 2147483647, %v885
          %v902 = vsub.f32 0.0, %v898
          %v903 = vsub.f32 0.0, %v899
          %v904 = vsub.f32 0.0, %v900
          %v905 = vsub.f32 0.0, %v901
          %v906 = vmul.f32 %v902, 1.442695
          %v907 = vpow.pop %v906
          %v908 = vmul.f32 %v903, 1.442695
          %v909 = vpow.pop %v908
          %v910 = vmul.f32 %v904, 1.442695
          %v911 = vpow.pop %v910
          %v912 = vmul.f32 %v905, 1.442695
          %v913 = vpow.pop %v912
          %v914 = vadd.f32 %v907, 1.0
          %v915 = vlog2.pop %v914
          %v916 = vmul.f32 %v915, 0.6931472
          %v917 = vmul.f32 -0.5, %v907
          %v918 = vadd.f32 %v917, 1.0
          %v919 = vmul.f32 %v918, %v907
          %v920 = vand.u32 2147483647, %v907
          %vm921 = vcmp.lt.f32.partialorder %v920, 0.0004427343
          %v922 = vsel %vm921, %v919, %v916
          %v923 = vadd.f32 %v909, 1.0
          %v924 = vlog2.pop %v923
          %v925 = vmul.f32 %v924, 0.6931472
          %v926 = vmul.f32 -0.5, %v909
          %v927 = vadd.f32 %v926, 1.0
          %v928 = vmul.f32 %v927, %v909
          %v929 = vand.u32 2147483647, %v909
          %vm930 = vcmp.lt.f32.partialorder %v929, 0.0004427343
          %v931 = vsel %vm930, %v928, %v925
          %v932 = vadd.f32 %v911, 1.0
          %v933 = vlog2.pop %v932
          %v934 = vmul.f32 %v933, 0.6931472
          %v935 = vmul.f32 -0.5, %v911
          %v936 = vadd.f32 %v935, 1.0
          %v937 = vmul.f32 %v936, %v911
          %v938 = vand.u32 2147483647, %v911
          %vm939 = vcmp.lt.f32.partialorder %v938, 0.0004427343
          %v940 = vsel %vm939, %v937, %v934
          %v941 = vadd.f32 %v913, 1.0
          %v942 = vlog2.pop %v941
          %v943 = vmul.f32 %v942, 0.6931472
          %v944 = vmul.f32 -0.5, %v913
          %v945 = vadd.f32 %v944, 1.0
          %v946 = vmul.f32 %v945, %v913
          %v947 = vand.u32 2147483647, %v913
          %vm948 = vcmp.lt.f32.partialorder %v947, 0.0004427343
          %v949 = vsel %vm948, %v946, %v943
          %v950 = vadd.f32 %v886, %v922
          %v951 = vadd.f32 %v887, %v931
          %v952 = vadd.f32 %v888, %v940
          %v953 = vadd.f32 %v889, %v949
          %v954 = vsel %vm890, %v894, %v950
          %v955 = vsel %vm891, %v895, %v951
          %v956 = vsel %vm892, %v896, %v952
          %v957 = vsel %vm893, %v897, %v953
          %v958 = vtanh.pop %v954
          %v959 = vtanh.pop %v955
          %v960 = vtanh.pop %v956
          %v961 = vtanh.pop %v957
          %v962 = vmul.f32 %v882, %v958
          %v963 = vmul.f32 %v883, %v959
          %v964 = vmul.f32 %v884, %v960
          %v965 = vmul.f32 %v885, %v961
          %v966 = vld [vmem:[%s4] sm:$0xf]
          %v968 = vlaneseq
          %v969 = vshrl.u32 %v968, 7
          %v970 = vsub.s32 0, %v969
          %v971 = vrot.slane %v966, %v970
          %v972 = vlaneseq
          %v973 = vshrl.u32 %v972, 7
          %v974 = vsub.s32 1, %v973
          %v975 = vrot.slane %v966, %v974
          %v976 = vlaneseq
          %v977 = vshrl.u32 %v976, 7
          %v978 = vsub.s32 2, %v977
          %v979 = vrot.slane %v966, %v978
          %v980 = vlaneseq
          %v981 = vshrl.u32 %v980, 7
          %v982 = vsub.s32 3, %v981
          %v983 = vrot.slane %v966, %v982
          %v988 = vmul.f32 %v962, %v971
          %v989 = vmul.f32 %v963, %v975
          %v990 = vmul.f32 %v964, %v979
          %v991 = vmul.f32 %v965, %v983
          %vm992 = vcmask 1040384
          %v993 = vsel %vm992, %v988, 0.0
          %v994 = vsel %vm992, %v989, 0.0
          %v995 = vadd.f32 %v993, %v994
          %v996 = vsel %vm992, %v990, 0.0
          %v997 = vadd.f32 %v995, %v996
          %v998 = vsel %vm992, %v991, 0.0
          %v999 = vadd.f32 %v997, %v998
          %1000 = vadd.xlane.f32.xlu0 %v999
          %v1001 = vpop.xlane.xlu0 %1000
          %v1002 = vld [vmem:[#allocation4] sm:$0x1]
          %v1003 = vadd.f32 %v1001, %v1002
          %vm1004 = vcmask 0
          %1005 = vst.msk [vmem:[%s316] sm:$0x1] %vm1004, %v1003
        $region64: #{tpu_custom_call.1} parent=43 // pred_fallthru
          _
        %p1006 = scmp.lt.s32.totalorder %s27, 1
        %s1007 = scalar_select %p1006, %s27, 1
        %s1008 = scalar_lea.vmem %s6, %s1007
        // Predicated region
        $region65: #{tpu_custom_call.1} parent=43 // pred_check
          %p1009 = pneg %p186
        $region66: #{tpu_custom_call.1} parent=43 // pred_check_branch
          %1011 = sbr.rel (%p1009) target = $region68
        $region67: #{tpu_custom_call.1} parent=43 // pred_region
          _
        $region68: #{tpu_custom_call.1} parent=43 // pred_fallthru
          _
      $region44: #{tpu_custom_call.1} parent=5 // pred_fallthru
        _
      %p1012 = scmp.le.s32.totalorder 2, %s18
      // Predicated region
      $region69: #{tpu_custom_call.1} parent=5 // pred_check
        %p1013 = pneg %p1012
      $region70: #{tpu_custom_call.1} parent=5 // pred_check_branch
        %1015 = sbr.rel (%p1013) target = $region72
      $region71: #{tpu_custom_call.1} parent=5 // pred_region
        %s1016 = ssub.s32 %s18, 2
        // Predicated region
        $region73: #{tpu_custom_call.1} parent=71 // pred_check
          %p1017 = pneg %p192
        $region74: #{tpu_custom_call.1} parent=71 // pred_check_branch
          %1019 = sbr.rel (%p1017) target = $region76
        $region75: #{tpu_custom_call.1} parent=71 // pred_region
          %p1020 = scmp.lt.s32.totalorder %s29, 1
          %s1021 = scalar_select %p1020, %s29, 1
          %s1022 = scalar_lea.vmem %s6, %s1021
        $region76: #{tpu_custom_call.1} parent=71 // pred_fallthru
          _
      $region72: #{tpu_custom_call.1} parent=5 // pred_fallthru
        _
    $region6: #{tpu_custom_call.1} parent=1 // loop_footer
      %s22 = sadd.s32 1, %s18
    $region7: #{tpu_custom_call.1} parent=1 // loop_footer_branch
      %17 = sbr.rel target = $region3
    $region8: #{tpu_custom_call.1} parent=1 // loop_exit
      _
    %1023 = vsyncpa [#allocation6], 1
    %s1024 = scalar_lea.sflag [#allocation6], 1
    %1025 = vsyncpa %s1024, 1
    %1026 = vsyncpa [#allocation8], 1

</llo_original>
